<compile_context>
chip_gen: v7x
topology: tpu7x:2x2x1
jax: 0.10.0
libtpu: 0.0.40
codegen_flags: <defaults>
</compile_context>

<pallas_src>
import jax
import jax.numpy as jnp
from jax.experimental import pallas as pl
from jax.experimental.pallas import tpu as pltpu

H1, H2, H3 = 256, 256, 128       # hidden layer widths from the module
LANE = 128                       # TPU lane width
SUBLANE = 8                      # TPU sublane width (f32)
DEFAULT_BATCH_TILE = 256         # multiple of 128 (v5e) and 256 (v6e/v7x)


def _round_up(x, m):
    return ((x + m - 1) // m) * m


def _mlp_kernel(x_ref,
                w1_ref, b1_ref,
                w2_ref, b2_ref,
                w3_ref, b3_ref,
                w4_ref, b4_ref,
                out_ref):
    """Fused 4-layer MLP forward on one batch tile.

    x / weights are bf16 (MXU inputs), accumulation + bias + ReLU in f32.
    """
    x = x_ref[...]                                                   # (TB, K_pad) bf16

    # Layer 1: Linear(state_dim, 256) + ReLU
    h = jnp.dot(x, w1_ref[...], preferred_element_type=jnp.float32) + b1_ref[...]
    h = jnp.maximum(h, 0.0).astype(jnp.bfloat16)

    # Layer 2: Linear(256, 256) + ReLU
    h = jnp.dot(h, w2_ref[...], preferred_element_type=jnp.float32) + b2_ref[...]
    h = jnp.maximum(h, 0.0).astype(jnp.bfloat16)

    # Dropout(0.3): identity in inference/eval mode.
    # TODO(synk): training-mode dropout would need pltpu.prng_seed +
    # pltpu.stateful_bernoulli masking with 1/(1-p) rescale.

    # Layer 3: Linear(256, 128) + ReLU
    h = jnp.dot(h, w3_ref[...], preferred_element_type=jnp.float32) + b3_ref[...]
    h = jnp.maximum(h, 0.0).astype(jnp.bfloat16)

    # Layer 4: Linear(128, action_dim_padded), no activation
    y = jnp.dot(h, w4_ref[...], preferred_element_type=jnp.float32) + b4_ref[...]

    out_ref[...] = y.astype(out_ref.dtype)


def nn_forward(x, params, *, batch_tile=DEFAULT_BATCH_TILE):
    """Run the fused MLP Pallas kernel.

    x: (batch, state_dim) float32
    params: dict with w1..w4 (in, out) f32 and b1..b4 (1, out) f32
    returns: (batch, action_dim) float32
    """
    batch, state_dim = x.shape
    action_dim = params["w4"].shape[1]

    k_pad = _round_up(state_dim, LANE)     # pad layer-1 K so MXU lanes are full
    n_pad = _round_up(action_dim, LANE)    # pad output N so stores are lane-dense

    # Batch tile selection: big tiles for real batches, minimal padding for
    # tiny (action-selection-style) batches.
    if batch <= batch_tile:
        tb = _round_up(batch, SUBLANE)
        padded_batch = tb
    else:
        tb = batch_tile
        padded_batch = _round_up(batch, tb)

    # --- operand prep (bf16 weights/activations, f32 biases, zero padding) ---
    xb = jnp.zeros((padded_batch, k_pad), jnp.bfloat16)
    xb = xb.at[:batch, :state_dim].set(x.astype(jnp.bfloat16))

    w1 = jnp.zeros((k_pad, H1), jnp.bfloat16)
    w1 = w1.at[:state_dim, :].set(params["w1"].astype(jnp.bfloat16))
    w2 = params["w2"].astype(jnp.bfloat16)
    w3 = params["w3"].astype(jnp.bfloat16)
    w4 = jnp.zeros((H3, n_pad), jnp.bfloat16)
    w4 = w4.at[:, :action_dim].set(params["w4"].astype(jnp.bfloat16))

    b1 = params["b1"].astype(jnp.float32)
    b2 = params["b2"].astype(jnp.float32)
    b3 = params["b3"].astype(jnp.float32)
    b4 = jnp.zeros((1, n_pad), jnp.float32)
    b4 = b4.at[:, :action_dim].set(params["b4"].astype(jnp.float32))

    grid = (padded_batch // tb,)

    def batch_block(i):      # activation blocks walk the batch axis
        return (i, 0)

    def resident(i):         # weights/biases: same block every step -> stay in VMEM
        return (0, 0)

    in_specs = [
        pl.BlockSpec((tb, k_pad), batch_block),   # x
        pl.BlockSpec(w1.shape, resident),
        pl.BlockSpec(b1.shape, resident),
        pl.BlockSpec(w2.shape, resident),
        pl.BlockSpec(b2.shape, resident),
        pl.BlockSpec(w3.shape, resident),
        pl.BlockSpec(b3.shape, resident),
        pl.BlockSpec(w4.shape, resident),
        pl.BlockSpec(b4.shape, resident),
    ]
    out_spec = pl.BlockSpec((tb, n_pad), batch_block)

    out_padded = pl.pallas_call(
        _mlp_kernel,
        out_shape=jax.ShapeDtypeStruct((padded_batch, n_pad), jnp.float32),
        grid=grid,
        in_specs=in_specs,
        out_specs=out_spec,
        compiler_params=pltpu.CompilerParams(
            dimension_semantics=("parallel",),   # batch axis -> shard across TCs (v7x)
        ),
    )(xb, w1, b1, w2, b2, w3, b3, w4, b4)

    return out_padded[:batch, :action_dim]


def init_params(key, state_dim, action_dim):
    """Deterministic init mirroring NN._init_weights:
    weights ~ N(0, 0.01), biases ~ U(-0.1, 0.1)."""
    dims = [(state_dim, 256), (256, 256), (256, 128), (128, action_dim)]
    params = {}
    for i, (din, dout) in enumerate(dims, start=1):
        key, kw, kb = jax.random.split(key, 3)
        params[f"w{i}"] = 0.01 * jax.random.normal(kw, (din, dout), dtype=jnp.float32)
        params[f"b{i}"] = jax.random.uniform(
            kb, (1, dout), minval=-0.1, maxval=0.1, dtype=jnp.float32)
    return params


def _reference_forward(x, params):
    """Plain-JAX reference replicating the kernel's bf16-input / f32-accumulate
    numerics (inputs cast to bf16, matmul accumulated in f32)."""
    def bdot(a, w):
        a32 = a.astype(jnp.bfloat16).astype(jnp.float32)
        w32 = w.astype(jnp.bfloat16).astype(jnp.float32)
        return jnp.dot(a32, w32, preferred_element_type=jnp.float32)

    h = jnp.maximum(bdot(x, params["w1"]) + params["b1"], 0.0)
    h = jnp.maximum(bdot(h, params["w2"]) + params["b2"], 0.0)
    h = jnp.maximum(bdot(h, params["w3"]) + params["b3"], 0.0)
    return bdot(h, params["w4"]) + params["b4"]


if __name__ == "__main__":
    key = jax.random.PRNGKey(0)

    state_dim = 32
    action_dim = 8
    params = init_params(key, state_dim, action_dim)

    # Small-batch check (single grid step, minimal padding).
    key, kx = jax.random.split(key)
    x_small = jax.random.normal(kx, (8, state_dim), dtype=jnp.float32)
    out_small = jax.block_until_ready(nn_forward(x_small, params))
    ref_small = _reference_forward(x_small, params)
    assert out_small.shape == (8, action_dim)
    assert jnp.allclose(out_small, ref_small, atol=2e-3, rtol=2e-3), \
        "small-batch mismatch vs JAX reference"

    # Larger (non-multiple) batch check to exercise the tiled / padded grid path.
    key, kx2 = jax.random.split(key)
    x_big = jax.random.normal(kx2, (300, state_dim), dtype=jnp.float32)
    out_big = jax.block_until_ready(nn_forward(x_big, params))
    ref_big = _reference_forward(x_big, params)
    assert out_big.shape == (300, action_dim)
    assert jnp.allclose(out_big, ref_big, atol=2e-3, rtol=2e-3), \
        "tiled-batch mismatch vs JAX reference"

    print("KERNEL_OK")
</pallas_src>

<mosaic_0001>
module attributes {stable_mosaic.version = 11 : i64} {
  func.func @_mlp_kernel(%arg0: i32, %arg1: memref<8x128xbf16, #tpu.memory_space<vmem>>, %arg2: memref<128x256xbf16, #tpu.memory_space<vmem>>, %arg3: memref<1x256xf32, #tpu.memory_space<vmem>>, %arg4: memref<256x256xbf16, #tpu.memory_space<vmem>>, %arg5: memref<1x256xf32, #tpu.memory_space<vmem>>, %arg6: memref<256x128xbf16, #tpu.memory_space<vmem>>, %arg7: memref<1x128xf32, #tpu.memory_space<vmem>>, %arg8: memref<128x128xbf16, #tpu.memory_space<vmem>>, %arg9: memref<1x128xf32, #tpu.memory_space<vmem>>, %arg10: memref<8x128xf32, #tpu.memory_space<vmem>>) attributes {dimension_semantics = [#tpu.dimension_semantics<parallel>], iteration_bounds = array<i64: 1>, scalar_prefetch = 0 : i64, scratch_operands = 0 : i64, tpu.core_type = #tpu.core_type<tc>, window_params = [{transform_indices = @transform_0, window_bounds = array<i64: 8, 128>}, {pipeline_mode = #tpu.pipeline_mode<synchronous>, transform_indices = @transform_1, window_bounds = array<i64: 128, 256>}, {pipeline_mode = #tpu.pipeline_mode<synchronous>, transform_indices = @transform_2, window_bounds = array<i64: 1, 256>}, {pipeline_mode = #tpu.pipeline_mode<synchronous>, transform_indices = @transform_3, window_bounds = array<i64: 256, 256>}, {pipeline_mode = #tpu.pipeline_mode<synchronous>, transform_indices = @transform_4, window_bounds = array<i64: 1, 256>}, {pipeline_mode = #tpu.pipeline_mode<synchronous>, transform_indices = @transform_5, window_bounds = array<i64: 256, 128>}, {pipeline_mode = #tpu.pipeline_mode<synchronous>, transform_indices = @transform_6, window_bounds = array<i64: 1, 128>}, {pipeline_mode = #tpu.pipeline_mode<synchronous>, transform_indices = @transform_7, window_bounds = array<i64: 128, 128>}, {pipeline_mode = #tpu.pipeline_mode<synchronous>, transform_indices = @transform_8, window_bounds = array<i64: 1, 128>}, {transform_indices = @transform_9, window_bounds = array<i64: 8, 128>}]} {
    %c0 = arith.constant 0 : index
    %c0_0 = arith.constant 0 : index
    %0 = vector.load %arg1[%c0, %c0_0] : memref<8x128xbf16, #tpu.memory_space<vmem>>, vector<8x128xbf16>
    %c0_1 = arith.constant 0 : index
    %c0_2 = arith.constant 0 : index
    %1 = vector.load %arg2[%c0_1, %c0_2] : memref<128x256xbf16, #tpu.memory_space<vmem>>, vector<128x256xbf16>
    %cst = arith.constant dense<0.000000e+00> : vector<8x256xf32>
    %2 = tpu.matmul %0, %1, %cst {dimension_numbers = #tpu.dot_dimension_numbers<[1], [0], [0], [1], [0, 0, 1, 1], [], []>} : vector<8x128xbf16>, vector<128x256xbf16>, vector<8x256xf32> -> vector<8x256xf32>
    %c0_3 = arith.constant 0 : index
    %c0_4 = arith.constant 0 : index
    %3 = vector.load %arg3[%c0_3, %c0_4] : memref<1x256xf32, #tpu.memory_space<vmem>>, vector<1x256xf32>
    %4 = vector.broadcast %3 : vector<1x256xf32> to vector<8x256xf32>
    %5 = arith.addf %2, %4 : vector<8x256xf32>
    %cst_5 = arith.constant 0.000000e+00 : f32
    %6 = vector.broadcast %cst_5 : f32 to vector<8x256xf32>
    %7 = arith.maximumf %5, %6 : vector<8x256xf32>
    %8 = arith.truncf %7 : vector<8x256xf32> to vector<8x256xbf16>
    %c0_6 = arith.constant 0 : index
    %c0_7 = arith.constant 0 : index
    %9 = vector.load %arg4[%c0_6, %c0_7] : memref<256x256xbf16, #tpu.memory_space<vmem>>, vector<256x256xbf16>
    %cst_8 = arith.constant dense<0.000000e+00> : vector<8x256xf32>
    %10 = tpu.matmul %8, %9, %cst_8 {dimension_numbers = #tpu.dot_dimension_numbers<[1], [0], [0], [1], [0, 0, 1, 1], [], []>} : vector<8x256xbf16>, vector<256x256xbf16>, vector<8x256xf32> -> vector<8x256xf32>
    %c0_9 = arith.constant 0 : index
    %c0_10 = arith.constant 0 : index
    %11 = vector.load %arg5[%c0_9, %c0_10] : memref<1x256xf32, #tpu.memory_space<vmem>>, vector<1x256xf32>
    %12 = vector.broadcast %11 : vector<1x256xf32> to vector<8x256xf32>
    %13 = arith.addf %10, %12 : vector<8x256xf32>
    %cst_11 = arith.constant 0.000000e+00 : f32
    %14 = vector.broadcast %cst_11 : f32 to vector<8x256xf32>
    %15 = arith.maximumf %13, %14 : vector<8x256xf32>
    %16 = arith.truncf %15 : vector<8x256xf32> to vector<8x256xbf16>
    %c0_12 = arith.constant 0 : index
    %c0_13 = arith.constant 0 : index
    %17 = vector.load %arg6[%c0_12, %c0_13] : memref<256x128xbf16, #tpu.memory_space<vmem>>, vector<256x128xbf16>
    %cst_14 = arith.constant dense<0.000000e+00> : vector<8x128xf32>
    %18 = tpu.matmul %16, %17, %cst_14 {dimension_numbers = #tpu.dot_dimension_numbers<[1], [0], [0], [1], [0, 0, 1, 1], [], []>} : vector<8x256xbf16>, vector<256x128xbf16>, vector<8x128xf32> -> vector<8x128xf32>
    %c0_15 = arith.constant 0 : index
    %c0_16 = arith.constant 0 : index
    %19 = vector.load %arg7[%c0_15, %c0_16] : memref<1x128xf32, #tpu.memory_space<vmem>>, vector<1x128xf32>
    %20 = vector.broadcast %19 : vector<1x128xf32> to vector<8x128xf32>
    %21 = arith.addf %18, %20 : vector<8x128xf32>
    %cst_17 = arith.constant 0.000000e+00 : f32
    %22 = vector.broadcast %cst_17 : f32 to vector<8x128xf32>
    %23 = arith.maximumf %21, %22 : vector<8x128xf32>
    %24 = arith.truncf %23 : vector<8x128xf32> to vector<8x128xbf16>
    %c0_18 = arith.constant 0 : index
    %c0_19 = arith.constant 0 : index
    %25 = vector.load %arg8[%c0_18, %c0_19] : memref<128x128xbf16, #tpu.memory_space<vmem>>, vector<128x128xbf16>
    %cst_20 = arith.constant dense<0.000000e+00> : vector<8x128xf32>
    %26 = tpu.matmul %24, %25, %cst_20 {dimension_numbers = #tpu.dot_dimension_numbers<[1], [0], [0], [1], [0, 0, 1, 1], [], []>} : vector<8x128xbf16>, vector<128x128xbf16>, vector<8x128xf32> -> vector<8x128xf32>
    %c0_21 = arith.constant 0 : index
    %c0_22 = arith.constant 0 : index
    %27 = vector.load %arg9[%c0_21, %c0_22] : memref<1x128xf32, #tpu.memory_space<vmem>>, vector<1x128xf32>
    %28 = vector.broadcast %27 : vector<1x128xf32> to vector<8x128xf32>
    %29 = arith.addf %26, %28 : vector<8x128xf32>
    %c0_23 = arith.constant 0 : index
    %c0_24 = arith.constant 0 : index
    %30 = vector.load %arg10[%c0_23, %c0_24] : memref<8x128xf32, #tpu.memory_space<vmem>>, vector<8x128xf32>
    tpu.vector_store %arg10[%c0_23, %c0_24], %29 {strides = array<i32>} : memref<8x128xf32, #tpu.memory_space<vmem>>, vector<8x128xf32>,
    return
  }
  func.func @transform_0(%arg0: i32) -> (i32, i32) {
    %c0_i32 = arith.constant 0 : i32
    %c0_i32_0 = arith.constant 0 : i32
    return %arg0, %c0_i32 : i32, i32
  }
  func.func @transform_1(%arg0: i32) -> (i32, i32) {
    %c0_i32 = arith.constant 0 : i32
    %c0_i32_0 = arith.constant 0 : i32
    %c0_i32_1 = arith.constant 0 : i32
    return %c0_i32, %c0_i32_0 : i32, i32
  }
  func.func @transform_2(%arg0: i32) -> (i32, i32) {
    %c0_i32 = arith.constant 0 : i32
    %c0_i32_0 = arith.constant 0 : i32
    %c0_i32_1 = arith.constant 0 : i32
    return %c0_i32, %c0_i32_0 : i32, i32
  }
  func.func @transform_3(%arg0: i32) -> (i32, i32) {
    %c0_i32 = arith.constant 0 : i32
    %c0_i32_0 = arith.constant 0 : i32
    %c0_i32_1 = arith.constant 0 : i32
    return %c0_i32, %c0_i32_0 : i32, i32
  }
  func.func @transform_4(%arg0: i32) -> (i32, i32) {
    %c0_i32 = arith.constant 0 : i32
    %c0_i32_0 = arith.constant 0 : i32
    %c0_i32_1 = arith.constant 0 : i32
    return %c0_i32, %c0_i32_0 : i32, i32
  }
  func.func @transform_5(%arg0: i32) -> (i32, i32) {
    %c0_i32 = arith.constant 0 : i32
    %c0_i32_0 = arith.constant 0 : i32
    %c0_i32_1 = arith.constant 0 : i32
    return %c0_i32, %c0_i32_0 : i32, i32
  }
  func.func @transform_6(%arg0: i32) -> (i32, i32) {
    %c0_i32 = arith.constant 0 : i32
    %c0_i32_0 = arith.constant 0 : i32
    %c0_i32_1 = arith.constant 0 : i32
    return %c0_i32, %c0_i32_0 : i32, i32
  }
  func.func @transform_7(%arg0: i32) -> (i32, i32) {
    %c0_i32 = arith.constant 0 : i32
    %c0_i32_0 = arith.constant 0 : i32
    %c0_i32_1 = arith.constant 0 : i32
    return %c0_i32, %c0_i32_0 : i32, i32
  }
  func.func @transform_8(%arg0: i32) -> (i32, i32) {
    %c0_i32 = arith.constant 0 : i32
    %c0_i32_0 = arith.constant 0 : i32
    %c0_i32_1 = arith.constant 0 : i32
    return %c0_i32, %c0_i32_0 : i32, i32
  }
  func.func @transform_9(%arg0: i32) -> (i32, i32) {
    %c0_i32 = arith.constant 0 : i32
    %c0_i32_0 = arith.constant 0 : i32
    return %arg0, %c0_i32 : i32, i32
  }
}

</mosaic_0001>

<llo_original>
// kernel: tpu_custom_call.1
$region0: #{tpu_custom_call.1}
  #allocation0 [shape = 'u32[]', space=smem, size = 0x4, offset = 0x4, fixed_abs, tag = 'smem constant byte address 0x4 - core index']
  #allocation1 [shape = 'u32[144,128]{1,0:T(1,128)}', space=vmem, size = 0x12000, scoped, tag = 'internal scratch']
  %s0 = inlined_call_operand.hbm [shape: bf16[8,128], index: 0, kind: input, shape index: {}]
  %s1 = inlined_call_operand.hbm [shape: bf16[128,256], index: 1, kind: input, shape index: {}]
  %s2 = inlined_call_operand.vmem [shape: f32[1,256], index: 2, kind: input, shape index: {}]
  %s3 = inlined_call_operand.hbm [shape: bf16[256,256], index: 3, kind: input, shape index: {}]
  %s4 = inlined_call_operand.vmem [shape: f32[1,256], index: 4, kind: input, shape index: {}]
  %s5 = inlined_call_operand.hbm [shape: bf16[256,128], index: 5, kind: input, shape index: {}]
  %s6 = inlined_call_operand.vmem [shape: f32[1,128], index: 6, kind: input, shape index: {}]
  %s7 = inlined_call_operand.hbm [shape: bf16[128,128], index: 7, kind: input, shape index: {}]
  %s8 = inlined_call_operand.vmem [shape: f32[1,128], index: 8, kind: input, shape index: {}]
  %s9 = inlined_call_operand.hbm [shape: f32[8,128], index: 9, kind: output, shape index: {}]
  %s10 = sld [smem:[#allocation0]]
  $region66: #{tpu_custom_call.1} parent=0
    _
  %s12 = ssub.s32 1, %s10
  %s13 = scalar_select 0, %s12, %s10
  $region1: #{tpu_custom_call.1} parent=0
    #allocation2 [shape = 'u8[2048]{0}', space=vmem, size = 0x800, scoped, tag = 'input window, operand 0, single buffered']
    #allocation3 [shape = 's32[1]{0}', space=sflag, size = 0x4, scoped, tag = 'scoped memory for tpu_custom_call.1']
    #allocation4 [shape = 's32[1]{0}', space=sflag, size = 0x4, scoped, tag = 'scoped memory for tpu_custom_call.1']
    #allocation5 [shape = 'u8[65536]{0}', space=vmem, size = 0x10000, scoped, tag = 'input window, operand 1, single buffered']
    #allocation6 [shape = 's32[1]{0}', space=sflag, size = 0x4, scoped, tag = 'scoped memory for tpu_custom_call.1']
    #allocation7 [shape = 'u8[131072]{0}', space=vmem, size = 0x20000, scoped, tag = 'input window, operand 3, single buffered']
    #allocation8 [shape = 'u8[65536]{0}', space=vmem, size = 0x10000, scoped, tag = 'input window, operand 5, single buffered']
    #allocation9 [shape = 's32[1]{0}', space=sflag, size = 0x4, scoped, tag = 'scoped memory for tpu_custom_call.1']
    #allocation10 [shape = 'u8[32768]{0}', space=vmem, size = 0x8000, scoped, tag = 'input window, operand 7, single buffered']
    #allocation11 [shape = 'u8[4096]{0}', space=vmem, size = 0x1000, scoped, tag = 'output window, operand 0, single buffered']
    %14 = vsyncpa [#allocation3], 0
    %15 = vsyncpa [#allocation6], 0
    %16 = vsyncpa [#allocation9], 0
    %17 = vsyncpa [#allocation4], 0
    // Predicated region
    $region2: #{tpu_custom_call.1} parent=1 // pred_check
      _
    $region3: #{tpu_custom_call.1} parent=1 // pred_check_branch
      %19 = sbr.rel (0) target = $region5
    $region4: #{tpu_custom_call.1} parent=1 // pred_region
      %s21 = ssub.s32 64, 64
      %22 = vsyncadd [#allocation3], %s21
      %s24 = sshll.u32 [#allocation2], 4
      %s25 = int_to_ptr.vmem [resolvable:$true] %s24
      %27 = dma.hbm_to_vmem [thread:$0]  %s0, 64, %s25, [#allocation3]
    $region5: #{tpu_custom_call.1} parent=1 // pred_fallthru
      _
    // Predicated region
    $region6: #{tpu_custom_call.1} parent=1 // pred_check
      _
    $region7: #{tpu_custom_call.1} parent=1 // pred_check_branch
      %29 = sbr.rel (0) target = $region9
    $region8: #{tpu_custom_call.1} parent=1 // pred_region
      %s31 = ssub.s32 2048, 2048
      %32 = vsyncadd [#allocation6], %s31
      %s33 = sshll.u32 [#allocation5], 4
      %s34 = int_to_ptr.vmem [resolvable:$true] %s33
      %39 = dma.hbm_to_vmem [thread:$0]  %s1, 2048, %s34, [#allocation6], 128, 128, 8
    $region9: #{tpu_custom_call.1} parent=1 // pred_fallthru
      _
    // Predicated region
    $region10: #{tpu_custom_call.1} parent=1 // pred_check
      _
    $region11: #{tpu_custom_call.1} parent=1 // pred_check_branch
      %41 = sbr.rel (0) target = $region13
    $region12: #{tpu_custom_call.1} parent=1 // pred_region
      _
    $region13: #{tpu_custom_call.1} parent=1 // pred_fallthru
      _
    // Predicated region
    $region14: #{tpu_custom_call.1} parent=1 // pred_check
      _
    $region15: #{tpu_custom_call.1} parent=1 // pred_check_branch
      %43 = sbr.rel (0) target = $region17
    $region16: #{tpu_custom_call.1} parent=1 // pred_region
      %s45 = ssub.s32 4096, 4096
      %46 = vsyncadd [#allocation6], %s45
      %s47 = sshll.u32 [#allocation7], 4
      %s48 = int_to_ptr.vmem [resolvable:$true] %s47
      %53 = dma.hbm_to_vmem [thread:$0]  %s3, 4096, %s48, [#allocation6], 128, 128, 8
    $region17: #{tpu_custom_call.1} parent=1 // pred_fallthru
      _
    // Predicated region
    $region18: #{tpu_custom_call.1} parent=1 // pred_check
      _
    $region19: #{tpu_custom_call.1} parent=1 // pred_check_branch
      %55 = sbr.rel (0) target = $region21
    $region20: #{tpu_custom_call.1} parent=1 // pred_region
      _
    $region21: #{tpu_custom_call.1} parent=1 // pred_fallthru
      _
    // Predicated region
    $region22: #{tpu_custom_call.1} parent=1 // pred_check
      _
    $region23: #{tpu_custom_call.1} parent=1 // pred_check_branch
      %57 = sbr.rel (0) target = $region25
    $region24: #{tpu_custom_call.1} parent=1 // pred_region
      %s59 = ssub.s32 2048, 2048
      %60 = vsyncadd [#allocation9], %s59
      %s61 = sshll.u32 [#allocation8], 4
      %s62 = int_to_ptr.vmem [resolvable:$true] %s61
      %67 = dma.hbm_to_vmem [thread:$0]  %s5, 2048, %s62, [#allocation9], 64, 64, 4
    $region25: #{tpu_custom_call.1} parent=1 // pred_fallthru
      _
    // Predicated region
    $region26: #{tpu_custom_call.1} parent=1 // pred_check
      _
    $region27: #{tpu_custom_call.1} parent=1 // pred_check_branch
      %69 = sbr.rel (0) target = $region29
    $region28: #{tpu_custom_call.1} parent=1 // pred_region
      _
    $region29: #{tpu_custom_call.1} parent=1 // pred_fallthru
      _
    // Predicated region
    $region30: #{tpu_custom_call.1} parent=1 // pred_check
      _
    $region31: #{tpu_custom_call.1} parent=1 // pred_check_branch
      %71 = sbr.rel (0) target = $region33
    $region32: #{tpu_custom_call.1} parent=1 // pred_region
      %s73 = ssub.s32 1024, 1024
      %74 = vsyncadd [#allocation9], %s73
      %s75 = sshll.u32 [#allocation10], 4
      %s76 = int_to_ptr.vmem [resolvable:$true] %s75
      %81 = dma.hbm_to_vmem [thread:$0]  %s7, 1024, %s76, [#allocation9], 64, 64, 4
    $region33: #{tpu_custom_call.1} parent=1 // pred_fallthru
      _
    // Predicated region
    $region34: #{tpu_custom_call.1} parent=1 // pred_check
      _
    $region35: #{tpu_custom_call.1} parent=1 // pred_check_branch
      %83 = sbr.rel (0) target = $region37
    $region36: #{tpu_custom_call.1} parent=1 // pred_region
      _
    $region37: #{tpu_custom_call.1} parent=1 // pred_fallthru
      _
    // Predicated region
    $region38: #{tpu_custom_call.1} parent=1 // pred_check
      _
    $region39: #{tpu_custom_call.1} parent=1 // pred_check_branch
      %85 = sbr.rel (0) target = $region41
    $region40: #{tpu_custom_call.1} parent=1 // pred_region
      %86 = dma.done [#allocation3], 64
    $region41: #{tpu_custom_call.1} parent=1 // pred_fallthru
      _
    // Predicated region
    $region42: #{tpu_custom_call.1} parent=1 // pred_check
      _
    $region43: #{tpu_custom_call.1} parent=1 // pred_check_branch
      %88 = sbr.rel (0) target = $region45
    $region44: #{tpu_custom_call.1} parent=1 // pred_region
      %89 = dma.done [#allocation6], 2048
    $region45: #{tpu_custom_call.1} parent=1 // pred_fallthru
      _
    // Predicated region
    $region46: #{tpu_custom_call.1} parent=1 // pred_check
      _
    $region47: #{tpu_custom_call.1} parent=1 // pred_check_branch
      %91 = sbr.rel (0) target = $region49
    $region48: #{tpu_custom_call.1} parent=1 // pred_region
      %92 = dma.done [#allocation6], 4096
    $region49: #{tpu_custom_call.1} parent=1 // pred_fallthru
      _
    // Predicated region
    $region50: #{tpu_custom_call.1} parent=1 // pred_check
      _
    $region51: #{tpu_custom_call.1} parent=1 // pred_check_branch
      %94 = sbr.rel (0) target = $region53
    $region52: #{tpu_custom_call.1} parent=1 // pred_region
      %95 = dma.done [#allocation9], 2048
    $region53: #{tpu_custom_call.1} parent=1 // pred_fallthru
      _
    // Predicated region
    $region54: #{tpu_custom_call.1} parent=1 // pred_check
      _
    $region55: #{tpu_custom_call.1} parent=1 // pred_check_branch
      %97 = sbr.rel (0) target = $region57
    $region56: #{tpu_custom_call.1} parent=1 // pred_region
      %98 = dma.done [#allocation9], 1024
    $region57: #{tpu_custom_call.1} parent=1 // pred_fallthru
      _
    %v100 = vld [vmem:[#allocation2] sm:$0xf]
    %v101 = vld [vmem:[#allocation5] sm:$0xff]
    %v102 = vld [vmem:[#allocation5 + $0x8] sm:$0xff]
    %v103 = vld [vmem:[#allocation5 + $0x10] sm:$0xff]
    %v104 = vld [vmem:[#allocation5 + $0x18] sm:$0xff]
    %v105 = vld [vmem:[#allocation5 + $0x20] sm:$0xff]
    %v106 = vld [vmem:[#allocation5 + $0x28] sm:$0xff]
    %v107 = vld [vmem:[#allocation5 + $0x30] sm:$0xff]
    %v108 = vld [vmem:[#allocation5 + $0x38] sm:$0xff]
    %v109 = vld [vmem:[#allocation5 + $0x40] sm:$0xff]
    %v110 = vld [vmem:[#allocation5 + $0x48] sm:$0xff]
    %v111 = vld [vmem:[#allocation5 + $0x50] sm:$0xff]
    %v112 = vld [vmem:[#allocation5 + $0x58] sm:$0xff]
    %v113 = vld [vmem:[#allocation5 + $0x60] sm:$0xff]
    %v114 = vld [vmem:[#allocation5 + $0x68] sm:$0xff]
    %v115 = vld [vmem:[#allocation5 + $0x70] sm:$0xff]
    %v116 = vld [vmem:[#allocation5 + $0x78] sm:$0xff]
    %v117 = vld [vmem:[%s2] sm:$0x3]
    %v119 = vlaneseq
    %v120 = vshrl.u32 %v119, 7
    %v121 = vsub.s32 0, %v120
    %v122 = vrot.slane %v117, %v121
    %v123 = vlaneseq
    %v124 = vshrl.u32 %v123, 7
    %v125 = vsub.s32 1, %v124
    %v126 = vrot.slane %v117, %v125
    %v145 = vunpack.c.l.b16 %v101
    %v146 = vunpack.c.h.b16 %v101
    %v147 = vunpack.c.l.b16 %v102
    %v148 = vunpack.c.h.b16 %v102
    %v149 = vunpack.c.l.b16 %v103
    %v150 = vunpack.c.h.b16 %v103
    %v151 = vunpack.c.l.b16 %v104
    %v152 = vunpack.c.h.b16 %v104
    %v153 = vunpack.c.l.b16 %v105
    %v154 = vunpack.c.h.b16 %v105
    %v155 = vunpack.c.l.b16 %v106
    %v156 = vunpack.c.h.b16 %v106
    %v157 = vunpack.c.l.b16 %v107
    %v158 = vunpack.c.h.b16 %v107
    %v159 = vunpack.c.l.b16 %v108
    %v160 = vunpack.c.h.b16 %v108
    %v161 = vunpack.c.l.b16 %v109
    %v162 = vunpack.c.h.b16 %v109
    %v163 = vunpack.c.l.b16 %v110
    %v164 = vunpack.c.h.b16 %v110
    %v165 = vunpack.c.l.b16 %v111
    %v166 = vunpack.c.h.b16 %v111
    %v167 = vunpack.c.l.b16 %v112
    %v168 = vunpack.c.h.b16 %v112
    %v169 = vunpack.c.l.b16 %v113
    %v170 = vunpack.c.h.b16 %v113
    %v171 = vunpack.c.l.b16 %v114
    %v172 = vunpack.c.h.b16 %v114
    %v173 = vunpack.c.l.b16 %v115
    %v174 = vunpack.c.h.b16 %v115
    %v175 = vunpack.c.l.b16 %v116
    %v176 = vunpack.c.h.b16 %v116
    %v177 = vpack.c.b16 %v147, %v145
    %v178 = vpack.c.b16 %v148, %v146
    %v179 = vpack.c.b16 %v151, %v149
    %v180 = vpack.c.b16 %v152, %v150
    %v181 = vpack.c.b16 %v155, %v153
    %v182 = vpack.c.b16 %v156, %v154
    %v183 = vpack.c.b16 %v159, %v157
    %v184 = vpack.c.b16 %v160, %v158
    %v185 = vpack.c.b16 %v163, %v161
    %v186 = vpack.c.b16 %v164, %v162
    %v187 = vpack.c.b16 %v167, %v165
    %v188 = vpack.c.b16 %v168, %v166
    %v189 = vpack.c.b16 %v171, %v169
    %v190 = vpack.c.b16 %v172, %v170
    %v191 = vpack.c.b16 %v175, %v173
    %v192 = vpack.c.b16 %v176, %v174
    %209 = vmatprep.subr.bf16.mxu0 %v178
    %210 = vmatpush1.bf16.msra.mxu0 %v177
    %211 = vmatprep.subr.bf16.mxu0 %v180
    %212 = vmatpush1.bf16.msra.mxu0 %v179
    %213 = vmatprep.subr.bf16.mxu0 %v182
    %214 = vmatpush1.bf16.msra.mxu0 %v181
    %215 = vmatprep.subr.bf16.mxu0 %v184
    %216 = vmatpush1.bf16.msra.mxu0 %v183
    %217 = vmatprep.subr.bf16.mxu0 %v186
    %218 = vmatpush1.bf16.msra.mxu0 %v185
    %219 = vmatprep.subr.bf16.mxu0 %v188
    %220 = vmatpush1.bf16.msra.mxu0 %v187
    %221 = vmatprep.subr.bf16.mxu0 %v190
    %222 = vmatpush1.bf16.msra.mxu0 %v189
    %223 = vmatprep.subr.bf16.mxu0 %v192
    %224 = vmatpush1.bf16.msra.mxu0 %v191
    %225 = vmatprep.subr.bf16.mxu0 0
    %226 = vmatpush1.bf16.msra.mxu0 0
    %227 = vmatprep.subr.bf16.mxu0 0
    %228 = vmatpush1.bf16.msra.mxu0 0
    %229 = vmatprep.subr.bf16.mxu0 0
    %230 = vmatpush1.bf16.msra.mxu0 0
    %231 = vmatprep.subr.bf16.mxu0 0
    %232 = vmatpush1.bf16.msra.mxu0 0
    %233 = vmatprep.subr.bf16.mxu0 0
    %234 = vmatpush1.bf16.msra.mxu0 0
    %235 = vmatprep.subr.bf16.mxu0 0
    %236 = vmatpush1.bf16.msra.mxu0 0
    %237 = vmatprep.subr.bf16.mxu0 0
    %238 = vmatpush1.bf16.msra.mxu0 0
    %239 = vmatprep.subr.bf16.mxu0 0
    %240 = vmatpush1.bf16.msra.mxu0 0
    %241 = vmatprep.mubr.bf16.mxu0 0
    %242 = vmatmul.mubr.bf16.gmra.mrb[0].mxu0 %v100
    %v243 = vpop.f32.mrb[0].mxu0
    %v244 = vadd.f32 %v122, %v243
    %v245 = vpop.f32.mrb[0].mxu0
    %v246 = vadd.f32 %v126, %v245
    %v247 = vpop.f32.mrb[0].mxu0
    %v248 = vpop.f32.mrb[0].mxu0
    %249 = vdwg.mxu0
    %v250 = vmax.f32 %v244, 0.0
    %v251 = vmax.f32 %v246, 0.0
    %v252 = vpack.c.bf16 %v250, %v250
    %v253 = vpack.c.bf16 %v251, %v251
    %v254 = vld [vmem:[#allocation7] sm:$0xff]
    %v255 = vld [vmem:[#allocation7 + $0x8] sm:$0xff]
    %v256 = vld [vmem:[#allocation7 + $0x10] sm:$0xff]
    %v257 = vld [vmem:[#allocation7 + $0x18] sm:$0xff]
    %v258 = vld [vmem:[#allocation7 + $0x20] sm:$0xff]
    %v259 = vld [vmem:[#allocation7 + $0x28] sm:$0xff]
    %v260 = vld [vmem:[#allocation7 + $0x30] sm:$0xff]
    %v261 = vld [vmem:[#allocation7 + $0x38] sm:$0xff]
    %v262 = vld [vmem:[#allocation7 + $0x40] sm:$0xff]
    %v263 = vld [vmem:[#allocation7 + $0x48] sm:$0xff]
    %v264 = vld [vmem:[#allocation7 + $0x50] sm:$0xff]
    %v265 = vld [vmem:[#allocation7 + $0x58] sm:$0xff]
    %v266 = vld [vmem:[#allocation7 + $0x60] sm:$0xff]
    %v267 = vld [vmem:[#allocation7 + $0x68] sm:$0xff]
    %v268 = vld [vmem:[#allocation7 + $0x70] sm:$0xff]
    %v269 = vld [vmem:[#allocation7 + $0x78] sm:$0xff]
    %v270 = vld [vmem:[#allocation7 + $0x80] sm:$0xff]
    %v271 = vld [vmem:[#allocation7 + $0x88] sm:$0xff]
    %v272 = vld [vmem:[#allocation7 + $0x90] sm:$0xff]
    %v273 = vld [vmem:[#allocation7 + $0x98] sm:$0xff]
    %v274 = vld [vmem:[#allocation7 + $0xa0] sm:$0xff]
    %v275 = vld [vmem:[#allocation7 + $0xa8] sm:$0xff]
    %v276 = vld [vmem:[#allocation7 + $0xb0] sm:$0xff]
    %v277 = vld [vmem:[#allocation7 + $0xb8] sm:$0xff]
    %v278 = vld [vmem:[#allocation7 + $0xc0] sm:$0xff]
    %v279 = vld [vmem:[#allocation7 + $0xc8] sm:$0xff]
    %v280 = vld [vmem:[#allocation7 + $0xd0] sm:$0xff]
    %v281 = vld [vmem:[#allocation7 + $0xd8] sm:$0xff]
    %v282 = vld [vmem:[#allocation7 + $0xe0] sm:$0xff]
    %v283 = vld [vmem:[#allocation7 + $0xe8] sm:$0xff]
    %v284 = vld [vmem:[#allocation7 + $0xf0] sm:$0xff]
    %v285 = vld [vmem:[#allocation7 + $0xf8] sm:$0xff]
    %v286 = vld [vmem:[%s4] sm:$0x3]
    %v288 = vlaneseq
    %v289 = vshrl.u32 %v288, 7
    %v290 = vsub.s32 0, %v289
    %v291 = vrot.slane %v286, %v290
    %v292 = vlaneseq
    %v293 = vshrl.u32 %v292, 7
    %v294 = vsub.s32 1, %v293
    %v295 = vrot.slane %v286, %v294
    %v330 = vunpack.c.l.b16 %v254
    %v331 = vunpack.c.h.b16 %v254
    %v332 = vunpack.c.l.b16 %v255
    %v333 = vunpack.c.h.b16 %v255
    %v334 = vunpack.c.l.b16 %v256
    %v335 = vunpack.c.h.b16 %v256
    %v336 = vunpack.c.l.b16 %v257
    %v337 = vunpack.c.h.b16 %v257
    %v338 = vunpack.c.l.b16 %v258
    %v339 = vunpack.c.h.b16 %v258
    %v340 = vunpack.c.l.b16 %v259
    %v341 = vunpack.c.h.b16 %v259
    %v342 = vunpack.c.l.b16 %v260
    %v343 = vunpack.c.h.b16 %v260
    %v344 = vunpack.c.l.b16 %v261
    %v345 = vunpack.c.h.b16 %v261
    %v346 = vunpack.c.l.b16 %v262
    %v347 = vunpack.c.h.b16 %v262
    %v348 = vunpack.c.l.b16 %v263
    %v349 = vunpack.c.h.b16 %v263
    %v350 = vunpack.c.l.b16 %v264
    %v351 = vunpack.c.h.b16 %v264
    %v352 = vunpack.c.l.b16 %v265
    %v353 = vunpack.c.h.b16 %v265
    %v354 = vunpack.c.l.b16 %v266
    %v355 = vunpack.c.h.b16 %v266
    %v356 = vunpack.c.l.b16 %v267
    %v357 = vunpack.c.h.b16 %v267
    %v358 = vunpack.c.l.b16 %v268
    %v359 = vunpack.c.h.b16 %v268
    %v360 = vunpack.c.l.b16 %v269
    %v361 = vunpack.c.h.b16 %v269
    %v362 = vunpack.c.l.b16 %v270
    %v363 = vunpack.c.h.b16 %v270
    %v364 = vunpack.c.l.b16 %v271
    %v365 = vunpack.c.h.b16 %v271
    %v366 = vunpack.c.l.b16 %v272
    %v367 = vunpack.c.h.b16 %v272
    %v368 = vunpack.c.l.b16 %v273
    %v369 = vunpack.c.h.b16 %v273
    %v370 = vunpack.c.l.b16 %v274
    %v371 = vunpack.c.h.b16 %v274
    %v372 = vunpack.c.l.b16 %v275
    %v373 = vunpack.c.h.b16 %v275
    %v374 = vunpack.c.l.b16 %v276
    %v375 = vunpack.c.h.b16 %v276
    %v376 = vunpack.c.l.b16 %v277
    %v377 = vunpack.c.h.b16 %v277
    %v378 = vunpack.c.l.b16 %v278
    %v379 = vunpack.c.h.b16 %v278
    %v380 = vunpack.c.l.b16 %v279
    %v381 = vunpack.c.h.b16 %v279
    %v382 = vunpack.c.l.b16 %v280
    %v383 = vunpack.c.h.b16 %v280
    %v384 = vunpack.c.l.b16 %v281
    %v385 = vunpack.c.h.b16 %v281
    %v386 = vunpack.c.l.b16 %v282
    %v387 = vunpack.c.h.b16 %v282
    %v388 = vunpack.c.l.b16 %v283
    %v389 = vunpack.c.h.b16 %v283
    %v390 = vunpack.c.l.b16 %v284
    %v391 = vunpack.c.h.b16 %v284
    %v392 = vunpack.c.l.b16 %v285
    %v393 = vunpack.c.h.b16 %v285
    %v394 = vpack.c.b16 %v332, %v330
    %v395 = vpack.c.b16 %v333, %v331
    %v396 = vpack.c.b16 %v336, %v334
    %v397 = vpack.c.b16 %v337, %v335
    %v398 = vpack.c.b16 %v340, %v338
    %v399 = vpack.c.b16 %v341, %v339
    %v400 = vpack.c.b16 %v344, %v342
    %v401 = vpack.c.b16 %v345, %v343
    %v402 = vpack.c.b16 %v348, %v346
    %v403 = vpack.c.b16 %v349, %v347
    %v404 = vpack.c.b16 %v352, %v350
    %v405 = vpack.c.b16 %v353, %v351
    %v406 = vpack.c.b16 %v356, %v354
    %v407 = vpack.c.b16 %v357, %v355
    %v408 = vpack.c.b16 %v360, %v358
    %v409 = vpack.c.b16 %v361, %v359
    %v410 = vpack.c.b16 %v364, %v362
    %v411 = vpack.c.b16 %v365, %v363
    %v412 = vpack.c.b16 %v368, %v366
    %v413 = vpack.c.b16 %v369, %v367
    %v414 = vpack.c.b16 %v372, %v370
    %v415 = vpack.c.b16 %v373, %v371
    %v416 = vpack.c.b16 %v376, %v374
    %v417 = vpack.c.b16 %v377, %v375
    %v418 = vpack.c.b16 %v380, %v378
    %v419 = vpack.c.b16 %v381, %v379
    %v420 = vpack.c.b16 %v384, %v382
    %v421 = vpack.c.b16 %v385, %v383
    %v422 = vpack.c.b16 %v388, %v386
    %v423 = vpack.c.b16 %v389, %v387
    %v424 = vpack.c.b16 %v392, %v390
    %v425 = vpack.c.b16 %v393, %v391
    %458 = vmatprep.subr.bf16.mxu0 %v395
    %459 = vmatpush1.bf16.msra.mxu0 %v394
    %460 = vmatprep.subr.bf16.mxu0 %v397
    %461 = vmatpush1.bf16.msra.mxu0 %v396
    %462 = vmatprep.subr.bf16.mxu0 %v399
    %463 = vmatpush1.bf16.msra.mxu0 %v398
    %464 = vmatprep.subr.bf16.mxu0 %v401
    %465 = vmatpush1.bf16.msra.mxu0 %v400
    %466 = vmatprep.subr.bf16.mxu0 %v403
    %467 = vmatpush1.bf16.msra.mxu0 %v402
    %468 = vmatprep.subr.bf16.mxu0 %v405
    %469 = vmatpush1.bf16.msra.mxu0 %v404
    %470 = vmatprep.subr.bf16.mxu0 %v407
    %471 = vmatpush1.bf16.msra.mxu0 %v406
    %472 = vmatprep.subr.bf16.mxu0 %v409
    %473 = vmatpush1.bf16.msra.mxu0 %v408
    %474 = vmatprep.subr.bf16.mxu0 %v411
    %475 = vmatpush1.bf16.msra.mxu0 %v410
    %476 = vmatprep.subr.bf16.mxu0 %v413
    %477 = vmatpush1.bf16.msra.mxu0 %v412
    %478 = vmatprep.subr.bf16.mxu0 %v415
    %479 = vmatpush1.bf16.msra.mxu0 %v414
    %480 = vmatprep.subr.bf16.mxu0 %v417
    %481 = vmatpush1.bf16.msra.mxu0 %v416
    %482 = vmatprep.subr.bf16.mxu0 %v419
    %483 = vmatpush1.bf16.msra.mxu0 %v418
    %484 = vmatprep.subr.bf16.mxu0 %v421
    %485 = vmatpush1.bf16.msra.mxu0 %v420
    %486 = vmatprep.subr.bf16.mxu0 %v423
    %487 = vmatpush1.bf16.msra.mxu0 %v422
    %488 = vmatprep.subr.bf16.mxu0 %v425
    %489 = vmatpush1.bf16.msra.mxu0 %v424
    %490 = vmatprep.mubr.bf16.mxu0 %v253
    %491 = vmatmul.mubr.bf16.gmra.mrb[0].mxu0 %v252
    %v492 = vpop.f32.mrb[0].mxu0
    %v493 = vadd.f32 %v291, %v492
    %v494 = vpop.f32.mrb[0].mxu0
    %v495 = vadd.f32 %v295, %v494
    %v496 = vpop.f32.mrb[0].mxu0
    %v497 = vpop.f32.mrb[0].mxu0
    %498 = vdwg.mxu0
    %v499 = vmax.f32 %v493, 0.0
    %v500 = vmax.f32 %v495, 0.0
    %v501 = vpack.c.bf16 %v499, %v499
    %v502 = vpack.c.bf16 %v500, %v500
    %v503 = vld [vmem:[#allocation8] sm:$0xf]
    %v504 = vld [vmem:[#allocation8 + $0x4] sm:$0xf]
    %v505 = vld [vmem:[#allocation8 + $0x8] sm:$0xf]
    %v506 = vld [vmem:[#allocation8 + $0xc] sm:$0xf]
    %v507 = vld [vmem:[#allocation8 + $0x10] sm:$0xf]
    %v508 = vld [vmem:[#allocation8 + $0x14] sm:$0xf]
    %v509 = vld [vmem:[#allocation8 + $0x18] sm:$0xf]
    %v510 = vld [vmem:[#allocation8 + $0x1c] sm:$0xf]
    %v511 = vld [vmem:[#allocation8 + $0x20] sm:$0xf]
    %v512 = vld [vmem:[#allocation8 + $0x24] sm:$0xf]
    %v513 = vld [vmem:[#allocation8 + $0x28] sm:$0xf]
    %v514 = vld [vmem:[#allocation8 + $0x2c] sm:$0xf]
    %v515 = vld [vmem:[#allocation8 + $0x30] sm:$0xf]
    %v516 = vld [vmem:[#allocation8 + $0x34] sm:$0xf]
    %v517 = vld [vmem:[#allocation8 + $0x38] sm:$0xf]
    %v518 = vld [vmem:[#allocation8 + $0x3c] sm:$0xf]
    %v519 = vld [vmem:[#allocation8 + $0x40] sm:$0xf]
    %v520 = vld [vmem:[#allocation8 + $0x44] sm:$0xf]
    %v521 = vld [vmem:[#allocation8 + $0x48] sm:$0xf]
    %v522 = vld [vmem:[#allocation8 + $0x4c] sm:$0xf]
    %v523 = vld [vmem:[#allocation8 + $0x50] sm:$0xf]
    %v524 = vld [vmem:[#allocation8 + $0x54] sm:$0xf]
    %v525 = vld [vmem:[#allocation8 + $0x58] sm:$0xf]
    %v526 = vld [vmem:[#allocation8 + $0x5c] sm:$0xf]
    %v527 = vld [vmem:[#allocation8 + $0x60] sm:$0xf]
    %v528 = vld [vmem:[#allocation8 + $0x64] sm:$0xf]
    %v529 = vld [vmem:[#allocation8 + $0x68] sm:$0xf]
    %v530 = vld [vmem:[#allocation8 + $0x6c] sm:$0xf]
    %v531 = vld [vmem:[#allocation8 + $0x70] sm:$0xf]
    %v532 = vld [vmem:[#allocation8 + $0x74] sm:$0xf]
    %v533 = vld [vmem:[#allocation8 + $0x78] sm:$0xf]
    %v534 = vld [vmem:[#allocation8 + $0x7c] sm:$0xf]
    %v535 = vld [vmem:[%s6] sm:$0x1]
    %v537 = vlaneseq
    %v538 = vshrl.u32 %v537, 7
    %v539 = vsub.s32 0, %v538
    %v540 = vrot.slane %v535, %v539
    %v574 = vunpack.c.l.b16 %v503
    %v575 = vunpack.c.l.b16 %v504
    %v576 = vunpack.c.l.b16 %v505
    %v577 = vunpack.c.l.b16 %v506
    %v578 = vunpack.c.l.b16 %v507
    %v579 = vunpack.c.l.b16 %v508
    %v580 = vunpack.c.l.b16 %v509
    %v581 = vunpack.c.l.b16 %v510
    %v582 = vunpack.c.l.b16 %v511
    %v583 = vunpack.c.l.b16 %v512
    %v584 = vunpack.c.l.b16 %v513
    %v585 = vunpack.c.l.b16 %v514
    %v586 = vunpack.c.l.b16 %v515
    %v587 = vunpack.c.l.b16 %v516
    %v588 = vunpack.c.l.b16 %v517
    %v589 = vunpack.c.l.b16 %v518
    %v590 = vunpack.c.l.b16 %v519
    %v591 = vunpack.c.l.b16 %v520
    %v592 = vunpack.c.l.b16 %v521
    %v593 = vunpack.c.l.b16 %v522
    %v594 = vunpack.c.l.b16 %v523
    %v595 = vunpack.c.l.b16 %v524
    %v596 = vunpack.c.l.b16 %v525
    %v597 = vunpack.c.l.b16 %v526
    %v598 = vunpack.c.l.b16 %v527
    %v599 = vunpack.c.l.b16 %v528
    %v600 = vunpack.c.l.b16 %v529
    %v601 = vunpack.c.l.b16 %v530
    %v602 = vunpack.c.l.b16 %v531
    %v603 = vunpack.c.l.b16 %v532
    %v604 = vunpack.c.l.b16 %v533
    %v605 = vunpack.c.l.b16 %v534
    %v606 = vpack.c.b16 %v575, %v574
    %v607 = vpack.c.b16 %v577, %v576
    %v608 = vpack.c.b16 %v579, %v578
    %v609 = vpack.c.b16 %v581, %v580
    %v610 = vpack.c.b16 %v583, %v582
    %v611 = vpack.c.b16 %v585, %v584
    %v612 = vpack.c.b16 %v587, %v586
    %v613 = vpack.c.b16 %v589, %v588
    %v614 = vpack.c.b16 %v591, %v590
    %v615 = vpack.c.b16 %v593, %v592
    %v616 = vpack.c.b16 %v595, %v594
    %v617 = vpack.c.b16 %v597, %v596
    %v618 = vpack.c.b16 %v599, %v598
    %v619 = vpack.c.b16 %v601, %v600
    %v620 = vpack.c.b16 %v603, %v602
    %v621 = vpack.c.b16 %v605, %v604
    %638 = vmatprep.subr.bf16.mxu0 0
    %639 = vmatpush1.bf16.msra.mxu0 %v606
    %640 = vmatprep.subr.bf16.mxu0 0
    %641 = vmatpush1.bf16.msra.mxu0 %v607
    %642 = vmatprep.subr.bf16.mxu0 0
    %643 = vmatpush1.bf16.msra.mxu0 %v608
    %644 = vmatprep.subr.bf16.mxu0 0
    %645 = vmatpush1.bf16.msra.mxu0 %v609
    %646 = vmatprep.subr.bf16.mxu0 0
    %647 = vmatpush1.bf16.msra.mxu0 %v610
    %648 = vmatprep.subr.bf16.mxu0 0
    %649 = vmatpush1.bf16.msra.mxu0 %v611
    %650 = vmatprep.subr.bf16.mxu0 0
    %651 = vmatpush1.bf16.msra.mxu0 %v612
    %652 = vmatprep.subr.bf16.mxu0 0
    %653 = vmatpush1.bf16.msra.mxu0 %v613
    %654 = vmatprep.subr.bf16.mxu0 0
    %655 = vmatpush1.bf16.msra.mxu0 %v614
    %656 = vmatprep.subr.bf16.mxu0 0
    %657 = vmatpush1.bf16.msra.mxu0 %v615
    %658 = vmatprep.subr.bf16.mxu0 0
    %659 = vmatpush1.bf16.msra.mxu0 %v616
    %660 = vmatprep.subr.bf16.mxu0 0
    %661 = vmatpush1.bf16.msra.mxu0 %v617
    %662 = vmatprep.subr.bf16.mxu0 0
    %663 = vmatpush1.bf16.msra.mxu0 %v618
    %664 = vmatprep.subr.bf16.mxu0 0
    %665 = vmatpush1.bf16.msra.mxu0 %v619
    %666 = vmatprep.subr.bf16.mxu0 0
    %667 = vmatpush1.bf16.msra.mxu0 %v620
    %668 = vmatprep.subr.bf16.mxu0 0
    %669 = vmatpush1.bf16.msra.mxu0 %v621
    %670 = vmatprep.mubr.bf16.mxu0 %v502
    %671 = vmatmul.mubr.bf16.gmra.mrb[0].mxu0 %v501
    %v672 = vpop.f32.mrb[0].mxu0
    %v673 = vadd.f32 %v540, %v672
    %v674 = vpop.f32.mrb[0].mxu0
    %v675 = vpop.f32.mrb[0].mxu0
    %v676 = vpop.f32.mrb[0].mxu0
    %677 = vdwg.mxu0
    %v678 = vmax.f32 %v673, 0.0
    %v679 = vpack.c.bf16 %v678, %v678
    %v680 = vld [vmem:[#allocation10] sm:$0xf]
    %v681 = vld [vmem:[#allocation10 + $0x4] sm:$0xf]
    %v682 = vld [vmem:[#allocation10 + $0x8] sm:$0xf]
    %v683 = vld [vmem:[#allocation10 + $0xc] sm:$0xf]
    %v684 = vld [vmem:[#allocation10 + $0x10] sm:$0xf]
    %v685 = vld [vmem:[#allocation10 + $0x14] sm:$0xf]
    %v686 = vld [vmem:[#allocation10 + $0x18] sm:$0xf]
    %v687 = vld [vmem:[#allocation10 + $0x1c] sm:$0xf]
    %v688 = vld [vmem:[#allocation10 + $0x20] sm:$0xf]
    %v689 = vld [vmem:[#allocation10 + $0x24] sm:$0xf]
    %v690 = vld [vmem:[#allocation10 + $0x28] sm:$0xf]
    %v691 = vld [vmem:[#allocation10 + $0x2c] sm:$0xf]
    %v692 = vld [vmem:[#allocation10 + $0x30] sm:$0xf]
    %v693 = vld [vmem:[#allocation10 + $0x34] sm:$0xf]
    %v694 = vld [vmem:[#allocation10 + $0x38] sm:$0xf]
    %v695 = vld [vmem:[#allocation10 + $0x3c] sm:$0xf]
    %v696 = vld [vmem:[%s8] sm:$0x1]
    %v698 = vlaneseq
    %v699 = vshrl.u32 %v698, 7
    %v700 = vsub.s32 0, %v699
    %v701 = vrot.slane %v696, %v700
    %v719 = vunpack.c.l.b16 %v680
    %v720 = vunpack.c.l.b16 %v681
    %v721 = vunpack.c.l.b16 %v682
    %v722 = vunpack.c.l.b16 %v683
    %v723 = vunpack.c.l.b16 %v684
    %v724 = vunpack.c.l.b16 %v685
    %v725 = vunpack.c.l.b16 %v686
    %v726 = vunpack.c.l.b16 %v687
    %v727 = vunpack.c.l.b16 %v688
    %v728 = vunpack.c.l.b16 %v689
    %v729 = vunpack.c.l.b16 %v690
    %v730 = vunpack.c.l.b16 %v691
    %v731 = vunpack.c.l.b16 %v692
    %v732 = vunpack.c.l.b16 %v693
    %v733 = vunpack.c.l.b16 %v694
    %v734 = vunpack.c.l.b16 %v695
    %v735 = vpack.c.b16 %v720, %v719
    %v736 = vpack.c.b16 %v722, %v721
    %v737 = vpack.c.b16 %v724, %v723
    %v738 = vpack.c.b16 %v726, %v725
    %v739 = vpack.c.b16 %v728, %v727
    %v740 = vpack.c.b16 %v730, %v729
    %v741 = vpack.c.b16 %v732, %v731
    %v742 = vpack.c.b16 %v734, %v733
    %751 = vmatprep.subr.bf16.mxu0 0
    %752 = vmatpush1.bf16.msra.mxu0 %v735
    %753 = vmatprep.subr.bf16.mxu0 0
    %754 = vmatpush1.bf16.msra.mxu0 %v736
    %755 = vmatprep.subr.bf16.mxu0 0
    %756 = vmatpush1.bf16.msra.mxu0 %v737
    %757 = vmatprep.subr.bf16.mxu0 0
    %758 = vmatpush1.bf16.msra.mxu0 %v738
    %759 = vmatprep.subr.bf16.mxu0 0
    %760 = vmatpush1.bf16.msra.mxu0 %v739
    %761 = vmatprep.subr.bf16.mxu0 0
    %762 = vmatpush1.bf16.msra.mxu0 %v740
    %763 = vmatprep.subr.bf16.mxu0 0
    %764 = vmatpush1.bf16.msra.mxu0 %v741
    %765 = vmatprep.subr.bf16.mxu0 0
    %766 = vmatpush1.bf16.msra.mxu0 %v742
    %767 = vmatprep.subr.bf16.mxu0 0
    %768 = vmatpush1.bf16.msra.mxu0 0
    %769 = vmatprep.subr.bf16.mxu0 0
    %770 = vmatpush1.bf16.msra.mxu0 0
    %771 = vmatprep.subr.bf16.mxu0 0
    %772 = vmatpush1.bf16.msra.mxu0 0
    %773 = vmatprep.subr.bf16.mxu0 0
    %774 = vmatpush1.bf16.msra.mxu0 0
    %775 = vmatprep.subr.bf16.mxu0 0
    %776 = vmatpush1.bf16.msra.mxu0 0
    %777 = vmatprep.subr.bf16.mxu0 0
    %778 = vmatpush1.bf16.msra.mxu0 0
    %779 = vmatprep.subr.bf16.mxu0 0
    %780 = vmatpush1.bf16.msra.mxu0 0
    %781 = vmatprep.subr.bf16.mxu0 0
    %782 = vmatpush1.bf16.msra.mxu0 0
    %783 = vmatprep.mubr.bf16.mxu0 0
    %784 = vmatmul.mubr.bf16.gmra.mrb[0].mxu0 %v679
    %v785 = vpop.f32.mrb[0].mxu0
    %v786 = vadd.f32 %v701, %v785
    %v787 = vpop.f32.mrb[0].mxu0
    %v788 = vpop.f32.mrb[0].mxu0
    %v789 = vpop.f32.mrb[0].mxu0
    %790 = vdwg.mxu0
    %791 = vst [vmem:[#allocation11] sm:$0xff] %v786
    // Predicated region
    $region58: #{tpu_custom_call.1} parent=1 // pred_check
      _
    $region59: #{tpu_custom_call.1} parent=1 // pred_check_branch
      %793 = sbr.rel (0) target = $region61
    $region60: #{tpu_custom_call.1} parent=1 // pred_region
      %s795 = ssub.s32 128, 128
      %796 = vsyncadd [#allocation4], %s795
      %s798 = sshll.u32 [#allocation11], 4
      %s799 = int_to_ptr.vmem [resolvable:$true] %s798
      %801 = dma.vmem_to_hbm [thread:$0]  %s799, 128, %s9, [#allocation4]
    $region61: #{tpu_custom_call.1} parent=1 // pred_fallthru
      _
    // Predicated region
    $region62: #{tpu_custom_call.1} parent=1 // pred_check
      _
    $region63: #{tpu_custom_call.1} parent=1 // pred_check_branch
      %803 = sbr.rel (0) target = $region65
    $region64: #{tpu_custom_call.1} parent=1 // pred_region
      %804 = dma.done [#allocation4], 128
    $region65: #{tpu_custom_call.1} parent=1 // pred_fallthru
      _
    %805 = vsyncpa [#allocation3], 1
    %806 = vsyncpa [#allocation6], 1
    %807 = vsyncpa [#allocation9], 1
    %808 = vsyncpa [#allocation4], 1

</llo_original>
